<compile_context>
chip_gen: v7x
topology: tpu7x:2x2x1
jax: 0.10.0
libtpu: 0.0.40
codegen_flags: <defaults>
</compile_context>

<pallas_src>
import jax
import jax.numpy as jnp
from jax import lax
from jax.experimental import pallas as pl
from jax.experimental.pallas import tpu as pltpu

IN_F = 127          # true input feature dim
HID = 64
OUT_F = 4
OUT_PAD = 128       # lane-dense output width (cols 4..127 are zero, sliced off in wrapper)
N_HIDDEN = 5        # number of 64->64 hidden Linear layers
NEG_SLOPE = 0.01    # PyTorch nn.LeakyReLU default


def _leaky(h):
    return jnp.where(h > 0, h, NEG_SLOPE * h)


def mlp_kernel(x_ref, w0_ref, b0_ref, wh_ref, bh_ref, wo_ref, bo_ref, o_ref):
    """Whole 7-layer MLP forward for one batch tile, entirely in VMEM / MXU."""
    # Layer 0: (TB, 127) @ (127, 64) -- bf16 operands, f32 accumulation.
    h = x_ref[...].astype(jnp.bfloat16)
    h = jnp.dot(h, w0_ref[...], preferred_element_type=jnp.float32) + b0_ref[...]
    h = _leaky(h)                                                   # (TB, 64) f32

    # Hidden layers 1..5: packed weights (5, 64, 64), unrolled loop.
    def hidden(i, h):
        a = jnp.dot(h.astype(jnp.bfloat16), wh_ref[i],
                    preferred_element_type=jnp.float32) + bh_ref[i]
        return _leaky(a)

    h = lax.fori_loop(0, N_HIDDEN, hidden, h, unroll=True)

    # Output layer: lane-padded to 128 so the store is unmasked / lane-dense.
    out = jnp.dot(h.astype(jnp.bfloat16), wo_ref[...],
                  preferred_element_type=jnp.float32) + bo_ref[...]  # (TB, 128)
    o_ref[...] = out.astype(o_ref.dtype)


def init_params(key):
    """PyTorch nn.Linear-style init: U(+-1/sqrt(fan_in)) for W and b (f32, unpadded)."""
    dims = [(IN_F, HID)] + [(HID, HID)] * N_HIDDEN + [(HID, OUT_F)]
    params = []
    for fin, fout in dims:
        key, k_w, k_b = jax.random.split(key, 3)
        bound = 1.0 / (fin ** 0.5)
        w = jax.random.uniform(k_w, (fin, fout), jnp.float32, -bound, bound)
        b = jax.random.uniform(k_b, (1, fout), jnp.float32, -bound, bound)
        params.append((w, b))
    return params


def prepare_params(params):
    """Repack params for the kernel: bf16 weights, stacked hidden layers,
    lane-dense (128-wide, zero-padded) final layer. Biases stay f32."""
    w0, b0 = params[0]
    hidden = params[1:1 + N_HIDDEN]
    wo, bo = params[-1]

    w0_k = w0.astype(jnp.bfloat16)                                   # (127, 64)
    b0_k = b0.astype(jnp.float32)                                    # (1, 64)
    wh_k = jnp.stack([w for w, _ in hidden]).astype(jnp.bfloat16)    # (5, 64, 64)
    bh_k = jnp.stack([b for _, b in hidden]).astype(jnp.float32)     # (5, 1, 64)
    wo_k = (jnp.zeros((HID, OUT_PAD), jnp.float32)
            .at[:, :OUT_F].set(wo).astype(jnp.bfloat16))             # (64, 128)
    bo_k = jnp.zeros((1, OUT_PAD), jnp.float32).at[:, :OUT_F].set(bo)  # (1, 128)
    return (w0_k, b0_k, wh_k, bh_k, wo_k, bo_k)


def saka_predictor_pallas(x, kparams, *, tb=256):
    """x: (B, 127) float32 -> (B, 4) float32."""
    w0_k, b0_k, wh_k, bh_k, wo_k, bo_k = kparams
    B = x.shape[0]
    # Clamp the batch tile for tiny batches; keep it a multiple of 8 (f32 sublanes).
    tb = max(8, min(tb, ((B + 7) // 8) * 8))
    B_pad = ((B + tb - 1) // tb) * tb
    if B_pad != B:
        x = jnp.zeros((B_pad, IN_F), x.dtype).at[:B].set(x)

    in_specs = [
        pl.BlockSpec((tb, IN_F), lambda i: (i, 0)),               # x (full 127-wide last dim)
        pl.BlockSpec((IN_F, HID), lambda i: (0, 0)),              # w0
        pl.BlockSpec((1, HID), lambda i: (0, 0)),                 # b0
        pl.BlockSpec((N_HIDDEN, HID, HID), lambda i: (0, 0, 0)),  # packed hidden weights
        pl.BlockSpec((N_HIDDEN, 1, HID), lambda i: (0, 0, 0)),    # packed hidden biases
        pl.BlockSpec((HID, OUT_PAD), lambda i: (0, 0)),           # w_out (lane-padded)
        pl.BlockSpec((1, OUT_PAD), lambda i: (0, 0)),             # b_out (lane-padded)
    ]

    out = pl.pallas_call(
        mlp_kernel,
        out_shape=jax.ShapeDtypeStruct((B_pad, OUT_PAD), jnp.float32),
        grid_spec=pltpu.PrefetchScalarGridSpec(
            num_scalar_prefetch=0,
            grid=(B_pad // tb,),
            in_specs=in_specs,
            out_specs=pl.BlockSpec((tb, OUT_PAD), lambda i: (i, 0)),
        ),
        compiler_params=pltpu.CompilerParams(
            dimension_semantics=("parallel",)),
    )(x, w0_k, b0_k, wh_k, bh_k, wo_k, bo_k)
    return out[:B, :OUT_F]


def saka_predictor_ref(x, params):
    """Pure-JAX f32 reference of the PyTorch forward."""
    h = x
    n = len(params)
    for i, (w, b) in enumerate(params):
        h = h @ w + b[0]
        if i < n - 1:
            h = jnp.where(h > 0, h, NEG_SLOPE * h)
    return h


if __name__ == "__main__":
    key = jax.random.PRNGKey(0)
    k_param, k_x = jax.random.split(key)

    params = init_params(k_param)
    kparams = prepare_params(params)
    x = jax.random.normal(k_x, (8, IN_F), dtype=jnp.float32)

    out = jax.block_until_ready(saka_predictor_pallas(x, kparams))
    ref = saka_predictor_ref(x, params)

    assert out.shape == (8, OUT_F)
    # bf16 matmul operands with f32 accumulation -> looser tolerance vs f32 reference.
    assert jnp.allclose(out, ref, atol=2e-2, rtol=2e-2), "mismatch vs reference"

    print("KERNEL_OK")
</pallas_src>

<mosaic_0001>
module attributes {stable_mosaic.version = 11 : i64} {
  func.func @mlp_kernel(%arg0: i32, %arg1: memref<8x127xf32, #tpu.memory_space<vmem>>, %arg2: memref<127x64xbf16, #tpu.memory_space<vmem>>, %arg3: memref<1x64xf32, #tpu.memory_space<vmem>>, %arg4: memref<5x64x64xbf16, #tpu.memory_space<vmem>>, %arg5: memref<5x1x64xf32, #tpu.memory_space<vmem>>, %arg6: memref<64x128xbf16, #tpu.memory_space<vmem>>, %arg7: memref<1x128xf32, #tpu.memory_space<vmem>>, %arg8: memref<8x128xf32, #tpu.memory_space<vmem>>) attributes {dimension_semantics = [#tpu.dimension_semantics<parallel>], iteration_bounds = array<i64: 1>, scalar_prefetch = 0 : i64, scratch_operands = 0 : i64, tpu.core_type = #tpu.core_type<tc>, window_params = [{transform_indices = @transform_0, window_bounds = array<i64: 8, 127>}, {pipeline_mode = #tpu.pipeline_mode<synchronous>, transform_indices = @transform_1, window_bounds = array<i64: 127, 64>}, {pipeline_mode = #tpu.pipeline_mode<synchronous>, transform_indices = @transform_2, window_bounds = array<i64: 1, 64>}, {pipeline_mode = #tpu.pipeline_mode<synchronous>, transform_indices = @transform_3, window_bounds = array<i64: 5, 64, 64>}, {pipeline_mode = #tpu.pipeline_mode<synchronous>, transform_indices = @transform_4, window_bounds = array<i64: 5, 1, 64>}, {pipeline_mode = #tpu.pipeline_mode<synchronous>, transform_indices = @transform_5, window_bounds = array<i64: 64, 128>}, {pipeline_mode = #tpu.pipeline_mode<synchronous>, transform_indices = @transform_6, window_bounds = array<i64: 1, 128>}, {transform_indices = @transform_7, window_bounds = array<i64: 8, 128>}]} {
    %c0 = arith.constant 0 : index
    %c0_0 = arith.constant 0 : index
    %0 = vector.load %arg1[%c0, %c0_0] : memref<8x127xf32, #tpu.memory_space<vmem>>, vector<8x127xf32>
    %1 = arith.truncf %0 : vector<8x127xf32> to vector<8x127xbf16>
    %c0_1 = arith.constant 0 : index
    %c0_2 = arith.constant 0 : index
    %2 = vector.load %arg2[%c0_1, %c0_2] : memref<127x64xbf16, #tpu.memory_space<vmem>>, vector<127x64xbf16>
    %cst = arith.constant dense<0.000000e+00> : vector<8x64xf32>
    %3 = tpu.matmul %1, %2, %cst {dimension_numbers = #tpu.dot_dimension_numbers<[1], [0], [0], [1], [0, 0, 1, 1], [], []>} : vector<8x127xbf16>, vector<127x64xbf16>, vector<8x64xf32> -> vector<8x64xf32>
    %c0_3 = arith.constant 0 : index
    %c0_4 = arith.constant 0 : index
    %4 = vector.load %arg3[%c0_3, %c0_4] : memref<1x64xf32, #tpu.memory_space<vmem>>, vector<1x64xf32>
    %5 = vector.broadcast %4 : vector<1x64xf32> to vector<8x64xf32>
    %6 = arith.addf %3, %5 : vector<8x64xf32>
    %cst_5 = arith.constant 0.000000e+00 : f32
    %7 = vector.broadcast %cst_5 : f32 to vector<8x64xf32>
    %8 = arith.cmpf ogt, %6, %7 : vector<8x64xf32>
    %cst_6 = arith.constant 0.00999999977 : f32
    %9 = vector.broadcast %cst_6 : f32 to vector<8x64xf32>
    %10 = arith.mulf %9, %6 : vector<8x64xf32>
    %11 = arith.select %8, %6, %10 : vector<8x64xi1>, vector<8x64xf32>
    %c0_i32 = arith.constant 0 : i32
    %12 = arith.truncf %11 : vector<8x64xf32> to vector<8x64xbf16>
    %13 = arith.index_cast %c0_i32 : i32 to index
    %c0_7 = arith.constant 0 : index
    %c0_8 = arith.constant 0 : index
    %14 = vector.load %arg4[%13, %c0_7, %c0_8] : memref<5x64x64xbf16, #tpu.memory_space<vmem>>, vector<1x64x64xbf16>
    %15 = vector.shape_cast %14 : vector<1x64x64xbf16> to vector<64x64xbf16>
    %cst_9 = arith.constant dense<0.000000e+00> : vector<8x64xf32>
    %16 = tpu.matmul %12, %15, %cst_9 {dimension_numbers = #tpu.dot_dimension_numbers<[1], [0], [0], [1], [0, 0, 1, 1], [], []>} : vector<8x64xbf16>, vector<64x64xbf16>, vector<8x64xf32> -> vector<8x64xf32>
    %17 = arith.index_cast %c0_i32 : i32 to index
    %c0_10 = arith.constant 0 : index
    %c0_11 = arith.constant 0 : index
    %18 = vector.load %arg5[%17, %c0_10, %c0_11] : memref<5x1x64xf32, #tpu.memory_space<vmem>>, vector<1x1x64xf32>
    %19 = vector.shape_cast %18 : vector<1x1x64xf32> to vector<1x64xf32>
    %20 = vector.broadcast %19 : vector<1x64xf32> to vector<8x64xf32>
    %21 = arith.addf %16, %20 : vector<8x64xf32>
    %cst_12 = arith.constant 0.000000e+00 : f32
    %22 = vector.broadcast %cst_12 : f32 to vector<8x64xf32>
    %23 = arith.cmpf ogt, %21, %22 : vector<8x64xf32>
    %cst_13 = arith.constant 0.00999999977 : f32
    %24 = vector.broadcast %cst_13 : f32 to vector<8x64xf32>
    %25 = arith.mulf %24, %21 : vector<8x64xf32>
    %26 = arith.select %23, %21, %25 : vector<8x64xi1>, vector<8x64xf32>
    %c1_i32 = arith.constant 1 : i32
    %27 = arith.truncf %26 : vector<8x64xf32> to vector<8x64xbf16>
    %28 = arith.index_cast %c1_i32 : i32 to index
    %c0_14 = arith.constant 0 : index
    %c0_15 = arith.constant 0 : index
    %29 = vector.load %arg4[%28, %c0_14, %c0_15] : memref<5x64x64xbf16, #tpu.memory_space<vmem>>, vector<1x64x64xbf16>
    %30 = vector.shape_cast %29 : vector<1x64x64xbf16> to vector<64x64xbf16>
    %cst_16 = arith.constant dense<0.000000e+00> : vector<8x64xf32>
    %31 = tpu.matmul %27, %30, %cst_16 {dimension_numbers = #tpu.dot_dimension_numbers<[1], [0], [0], [1], [0, 0, 1, 1], [], []>} : vector<8x64xbf16>, vector<64x64xbf16>, vector<8x64xf32> -> vector<8x64xf32>
    %32 = arith.index_cast %c1_i32 : i32 to index
    %c0_17 = arith.constant 0 : index
    %c0_18 = arith.constant 0 : index
    %33 = vector.load %arg5[%32, %c0_17, %c0_18] : memref<5x1x64xf32, #tpu.memory_space<vmem>>, vector<1x1x64xf32>
    %34 = vector.shape_cast %33 : vector<1x1x64xf32> to vector<1x64xf32>
    %35 = vector.broadcast %34 : vector<1x64xf32> to vector<8x64xf32>
    %36 = arith.addf %31, %35 : vector<8x64xf32>
    %cst_19 = arith.constant 0.000000e+00 : f32
    %37 = vector.broadcast %cst_19 : f32 to vector<8x64xf32>
    %38 = arith.cmpf ogt, %36, %37 : vector<8x64xf32>
    %cst_20 = arith.constant 0.00999999977 : f32
    %39 = vector.broadcast %cst_20 : f32 to vector<8x64xf32>
    %40 = arith.mulf %39, %36 : vector<8x64xf32>
    %41 = arith.select %38, %36, %40 : vector<8x64xi1>, vector<8x64xf32>
    %c2_i32 = arith.constant 2 : i32
    %42 = arith.truncf %41 : vector<8x64xf32> to vector<8x64xbf16>
    %43 = arith.index_cast %c2_i32 : i32 to index
    %c0_21 = arith.constant 0 : index
    %c0_22 = arith.constant 0 : index
    %44 = vector.load %arg4[%43, %c0_21, %c0_22] : memref<5x64x64xbf16, #tpu.memory_space<vmem>>, vector<1x64x64xbf16>
    %45 = vector.shape_cast %44 : vector<1x64x64xbf16> to vector<64x64xbf16>
    %cst_23 = arith.constant dense<0.000000e+00> : vector<8x64xf32>
    %46 = tpu.matmul %42, %45, %cst_23 {dimension_numbers = #tpu.dot_dimension_numbers<[1], [0], [0], [1], [0, 0, 1, 1], [], []>} : vector<8x64xbf16>, vector<64x64xbf16>, vector<8x64xf32> -> vector<8x64xf32>
    %47 = arith.index_cast %c2_i32 : i32 to index
    %c0_24 = arith.constant 0 : index
    %c0_25 = arith.constant 0 : index
    %48 = vector.load %arg5[%47, %c0_24, %c0_25] : memref<5x1x64xf32, #tpu.memory_space<vmem>>, vector<1x1x64xf32>
    %49 = vector.shape_cast %48 : vector<1x1x64xf32> to vector<1x64xf32>
    %50 = vector.broadcast %49 : vector<1x64xf32> to vector<8x64xf32>
    %51 = arith.addf %46, %50 : vector<8x64xf32>
    %cst_26 = arith.constant 0.000000e+00 : f32
    %52 = vector.broadcast %cst_26 : f32 to vector<8x64xf32>
    %53 = arith.cmpf ogt, %51, %52 : vector<8x64xf32>
    %cst_27 = arith.constant 0.00999999977 : f32
    %54 = vector.broadcast %cst_27 : f32 to vector<8x64xf32>
    %55 = arith.mulf %54, %51 : vector<8x64xf32>
    %56 = arith.select %53, %51, %55 : vector<8x64xi1>, vector<8x64xf32>
    %c3_i32 = arith.constant 3 : i32
    %57 = arith.truncf %56 : vector<8x64xf32> to vector<8x64xbf16>
    %58 = arith.index_cast %c3_i32 : i32 to index
    %c0_28 = arith.constant 0 : index
    %c0_29 = arith.constant 0 : index
    %59 = vector.load %arg4[%58, %c0_28, %c0_29] : memref<5x64x64xbf16, #tpu.memory_space<vmem>>, vector<1x64x64xbf16>
    %60 = vector.shape_cast %59 : vector<1x64x64xbf16> to vector<64x64xbf16>
    %cst_30 = arith.constant dense<0.000000e+00> : vector<8x64xf32>
    %61 = tpu.matmul %57, %60, %cst_30 {dimension_numbers = #tpu.dot_dimension_numbers<[1], [0], [0], [1], [0, 0, 1, 1], [], []>} : vector<8x64xbf16>, vector<64x64xbf16>, vector<8x64xf32> -> vector<8x64xf32>
    %62 = arith.index_cast %c3_i32 : i32 to index
    %c0_31 = arith.constant 0 : index
    %c0_32 = arith.constant 0 : index
    %63 = vector.load %arg5[%62, %c0_31, %c0_32] : memref<5x1x64xf32, #tpu.memory_space<vmem>>, vector<1x1x64xf32>
    %64 = vector.shape_cast %63 : vector<1x1x64xf32> to vector<1x64xf32>
    %65 = vector.broadcast %64 : vector<1x64xf32> to vector<8x64xf32>
    %66 = arith.addf %61, %65 : vector<8x64xf32>
    %cst_33 = arith.constant 0.000000e+00 : f32
    %67 = vector.broadcast %cst_33 : f32 to vector<8x64xf32>
    %68 = arith.cmpf ogt, %66, %67 : vector<8x64xf32>
    %cst_34 = arith.constant 0.00999999977 : f32
    %69 = vector.broadcast %cst_34 : f32 to vector<8x64xf32>
    %70 = arith.mulf %69, %66 : vector<8x64xf32>
    %71 = arith.select %68, %66, %70 : vector<8x64xi1>, vector<8x64xf32>
    %c4_i32 = arith.constant 4 : i32
    %72 = arith.truncf %71 : vector<8x64xf32> to vector<8x64xbf16>
    %73 = arith.index_cast %c4_i32 : i32 to index
    %c0_35 = arith.constant 0 : index
    %c0_36 = arith.constant 0 : index
    %74 = vector.load %arg4[%73, %c0_35, %c0_36] : memref<5x64x64xbf16, #tpu.memory_space<vmem>>, vector<1x64x64xbf16>
    %75 = vector.shape_cast %74 : vector<1x64x64xbf16> to vector<64x64xbf16>
    %cst_37 = arith.constant dense<0.000000e+00> : vector<8x64xf32>
    %76 = tpu.matmul %72, %75, %cst_37 {dimension_numbers = #tpu.dot_dimension_numbers<[1], [0], [0], [1], [0, 0, 1, 1], [], []>} : vector<8x64xbf16>, vector<64x64xbf16>, vector<8x64xf32> -> vector<8x64xf32>
    %77 = arith.index_cast %c4_i32 : i32 to index
    %c0_38 = arith.constant 0 : index
    %c0_39 = arith.constant 0 : index
    %78 = vector.load %arg5[%77, %c0_38, %c0_39] : memref<5x1x64xf32, #tpu.memory_space<vmem>>, vector<1x1x64xf32>
    %79 = vector.shape_cast %78 : vector<1x1x64xf32> to vector<1x64xf32>
    %80 = vector.broadcast %79 : vector<1x64xf32> to vector<8x64xf32>
    %81 = arith.addf %76, %80 : vector<8x64xf32>
    %cst_40 = arith.constant 0.000000e+00 : f32
    %82 = vector.broadcast %cst_40 : f32 to vector<8x64xf32>
    %83 = arith.cmpf ogt, %81, %82 : vector<8x64xf32>
    %cst_41 = arith.constant 0.00999999977 : f32
    %84 = vector.broadcast %cst_41 : f32 to vector<8x64xf32>
    %85 = arith.mulf %84, %81 : vector<8x64xf32>
    %86 = arith.select %83, %81, %85 : vector<8x64xi1>, vector<8x64xf32>
    %c5_i32 = arith.constant 5 : i32
    %87 = arith.truncf %86 : vector<8x64xf32> to vector<8x64xbf16>
    %c0_42 = arith.constant 0 : index
    %c0_43 = arith.constant 0 : index
    %88 = vector.load %arg6[%c0_42, %c0_43] : memref<64x128xbf16, #tpu.memory_space<vmem>>, vector<64x128xbf16>
    %cst_44 = arith.constant dense<0.000000e+00> : vector<8x128xf32>
    %89 = tpu.matmul %87, %88, %cst_44 {dimension_numbers = #tpu.dot_dimension_numbers<[1], [0], [0], [1], [0, 0, 1, 1], [], []>} : vector<8x64xbf16>, vector<64x128xbf16>, vector<8x128xf32> -> vector<8x128xf32>
    %c0_45 = arith.constant 0 : index
    %c0_46 = arith.constant 0 : index
    %90 = vector.load %arg7[%c0_45, %c0_46] : memref<1x128xf32, #tpu.memory_space<vmem>>, vector<1x128xf32>
    %91 = vector.broadcast %90 : vector<1x128xf32> to vector<8x128xf32>
    %92 = arith.addf %89, %91 : vector<8x128xf32>
    %c0_47 = arith.constant 0 : index
    %c0_48 = arith.constant 0 : index
    %93 = vector.load %arg8[%c0_47, %c0_48] : memref<8x128xf32, #tpu.memory_space<vmem>>, vector<8x128xf32>
    tpu.vector_store %arg8[%c0_47, %c0_48], %92 {strides = array<i32>} : memref<8x128xf32, #tpu.memory_space<vmem>>, vector<8x128xf32>,
    return
  }
  func.func @transform_0(%arg0: i32) -> (i32, i32) {
    %c0_i32 = arith.constant 0 : i32
    %c0_i32_0 = arith.constant 0 : i32
    return %arg0, %c0_i32 : i32, i32
  }
  func.func @transform_1(%arg0: i32) -> (i32, i32) {
    %c0_i32 = arith.constant 0 : i32
    %c0_i32_0 = arith.constant 0 : i32
    %c0_i32_1 = arith.constant 0 : i32
    return %c0_i32, %c0_i32_0 : i32, i32
  }
  func.func @transform_2(%arg0: i32) -> (i32, i32) {
    %c0_i32 = arith.constant 0 : i32
    %c0_i32_0 = arith.constant 0 : i32
    %c0_i32_1 = arith.constant 0 : i32
    return %c0_i32, %c0_i32_0 : i32, i32
  }
  func.func @transform_3(%arg0: i32) -> (i32, i32, i32) {
    %c0_i32 = arith.constant 0 : i32
    %c0_i32_0 = arith.constant 0 : i32
    %c0_i32_1 = arith.constant 0 : i32
    %c0_i32_2 = arith.constant 0 : i32
    return %c0_i32, %c0_i32_0, %c0_i32_1 : i32, i32, i32
  }
  func.func @transform_4(%arg0: i32) -> (i32, i32, i32) {
    %c0_i32 = arith.constant 0 : i32
    %c0_i32_0 = arith.constant 0 : i32
    %c0_i32_1 = arith.constant 0 : i32
    %c0_i32_2 = arith.constant 0 : i32
    return %c0_i32, %c0_i32_0, %c0_i32_1 : i32, i32, i32
  }
  func.func @transform_5(%arg0: i32) -> (i32, i32) {
    %c0_i32 = arith.constant 0 : i32
    %c0_i32_0 = arith.constant 0 : i32
    %c0_i32_1 = arith.constant 0 : i32
    return %c0_i32, %c0_i32_0 : i32, i32
  }
  func.func @transform_6(%arg0: i32) -> (i32, i32) {
    %c0_i32 = arith.constant 0 : i32
    %c0_i32_0 = arith.constant 0 : i32
    %c0_i32_1 = arith.constant 0 : i32
    return %c0_i32, %c0_i32_0 : i32, i32
  }
  func.func @transform_7(%arg0: i32) -> (i32, i32) {
    %c0_i32 = arith.constant 0 : i32
    %c0_i32_0 = arith.constant 0 : i32
    return %arg0, %c0_i32 : i32, i32
  }
}

</mosaic_0001>

<llo_original>
// kernel: tpu_custom_call.1
$region0: #{tpu_custom_call.1}
  #allocation0 [shape = 'u32[]', space=smem, size = 0x4, offset = 0x4, fixed_abs, tag = 'smem constant byte address 0x4 - core index']
  #allocation1 [shape = 'u32[144,128]{1,0:T(1,128)}', space=vmem, size = 0x12000, scoped, tag = 'internal scratch']
  %s0 = inlined_call_operand.vmem [shape: f32[8,127], index: 0, kind: input, shape index: {}]
  %s1 = inlined_call_operand.vmem [shape: bf16[127,64], index: 1, kind: input, shape index: {}]
  %s2 = inlined_call_operand.vmem [shape: f32[1,64], index: 2, kind: input, shape index: {}]
  %s3 = inlined_call_operand.hbm [shape: bf16[5,64,64], index: 3, kind: input, shape index: {}]
  %s4 = inlined_call_operand.vmem [shape: f32[5,1,64], index: 4, kind: input, shape index: {}]
  %s5 = inlined_call_operand.vmem [shape: bf16[64,128], index: 5, kind: input, shape index: {}]
  %s6 = inlined_call_operand.vmem [shape: f32[1,128], index: 6, kind: input, shape index: {}]
  %s7 = inlined_call_operand.hbm [shape: f32[8,128], index: 7, kind: output, shape index: {}]
  %s8 = sld [smem:[#allocation0]]
  $region42: #{tpu_custom_call.1} parent=0
    _
  %s10 = ssub.s32 1, %s8
  %s11 = scalar_select 0, %s10, %s8
  $region1: #{tpu_custom_call.1} parent=0
    #allocation2 [shape = 'u8[81920]{0}', space=vmem, size = 0x14000, scoped, tag = 'input window, operand 3, single buffered']
    #allocation3 [shape = 's32[1]{0}', space=sflag, size = 0x4, scoped, tag = 'scoped memory for tpu_custom_call.1']
    #allocation4 [shape = 's32[1]{0}', space=sflag, size = 0x4, scoped, tag = 'scoped memory for tpu_custom_call.1']
    #allocation5 [shape = 'u8[4096]{0}', space=vmem, size = 0x1000, scoped, tag = 'output window, operand 0, single buffered']
    %12 = vsyncpa [#allocation3], 0
    %13 = vsyncpa [#allocation4], 0
    // Predicated region
    $region2: #{tpu_custom_call.1} parent=1 // pred_check
      _
    $region3: #{tpu_custom_call.1} parent=1 // pred_check_branch
      %15 = sbr.rel (0) target = $region5
    $region4: #{tpu_custom_call.1} parent=1 // pred_region
      _
    $region5: #{tpu_custom_call.1} parent=1 // pred_fallthru
      _
    // Predicated region
    $region6: #{tpu_custom_call.1} parent=1 // pred_check
      _
    $region7: #{tpu_custom_call.1} parent=1 // pred_check_branch
      %17 = sbr.rel (0) target = $region9
    $region8: #{tpu_custom_call.1} parent=1 // pred_region
      _
    $region9: #{tpu_custom_call.1} parent=1 // pred_fallthru
      _
    // Predicated region
    $region10: #{tpu_custom_call.1} parent=1 // pred_check
      _
    $region11: #{tpu_custom_call.1} parent=1 // pred_check_branch
      %19 = sbr.rel (0) target = $region13
    $region12: #{tpu_custom_call.1} parent=1 // pred_region
      _
    $region13: #{tpu_custom_call.1} parent=1 // pred_fallthru
      _
    // Predicated region
    $region14: #{tpu_custom_call.1} parent=1 // pred_check
      _
    $region15: #{tpu_custom_call.1} parent=1 // pred_check_branch
      %21 = sbr.rel (0) target = $region17
    $region16: #{tpu_custom_call.1} parent=1 // pred_region
      %s23 = ssub.s32 2560, 2560
      %24 = vsyncadd [#allocation3], %s23
      %s25 = sshll.u32 [#allocation2], 4
      %s26 = int_to_ptr.vmem [resolvable:$true] %s25
      %31 = dma.hbm_to_vmem [thread:$0]  %s3, 2560, %s26, [#allocation3], 64, 64, 4
    $region17: #{tpu_custom_call.1} parent=1 // pred_fallthru
      _
    // Predicated region
    $region18: #{tpu_custom_call.1} parent=1 // pred_check
      _
    $region19: #{tpu_custom_call.1} parent=1 // pred_check_branch
      %33 = sbr.rel (0) target = $region21
    $region20: #{tpu_custom_call.1} parent=1 // pred_region
      _
    $region21: #{tpu_custom_call.1} parent=1 // pred_fallthru
      _
    // Predicated region
    $region22: #{tpu_custom_call.1} parent=1 // pred_check
      _
    $region23: #{tpu_custom_call.1} parent=1 // pred_check_branch
      %35 = sbr.rel (0) target = $region25
    $region24: #{tpu_custom_call.1} parent=1 // pred_region
      _
    $region25: #{tpu_custom_call.1} parent=1 // pred_fallthru
      _
    // Predicated region
    $region26: #{tpu_custom_call.1} parent=1 // pred_check
      _
    $region27: #{tpu_custom_call.1} parent=1 // pred_check_branch
      %37 = sbr.rel (0) target = $region29
    $region28: #{tpu_custom_call.1} parent=1 // pred_region
      _
    $region29: #{tpu_custom_call.1} parent=1 // pred_fallthru
      _
    // Predicated region
    $region30: #{tpu_custom_call.1} parent=1 // pred_check
      _
    $region31: #{tpu_custom_call.1} parent=1 // pred_check_branch
      %39 = sbr.rel (0) target = $region33
    $region32: #{tpu_custom_call.1} parent=1 // pred_region
      %40 = dma.done [#allocation3], 2560
    $region33: #{tpu_custom_call.1} parent=1 // pred_fallthru
      _
    %v42 = vld [vmem:[%s0] sm:$0xff]
    %v43 = vpack.c.bf16 %v42, %v42
    %v44 = vld [vmem:[%s1] sm:$0xf]
    %v45 = vld [vmem:[%s1 + $0x4] sm:$0xf]
    %v46 = vld [vmem:[%s1 + $0x8] sm:$0xf]
    %v47 = vld [vmem:[%s1 + $0xc] sm:$0xf]
    %v48 = vld [vmem:[%s1 + $0x10] sm:$0xf]
    %v49 = vld [vmem:[%s1 + $0x14] sm:$0xf]
    %v50 = vld [vmem:[%s1 + $0x18] sm:$0xf]
    %v51 = vld [vmem:[%s1 + $0x1c] sm:$0xf]
    %v52 = vld [vmem:[%s1 + $0x20] sm:$0xf]
    %v53 = vld [vmem:[%s1 + $0x24] sm:$0xf]
    %v54 = vld [vmem:[%s1 + $0x28] sm:$0xf]
    %v55 = vld [vmem:[%s1 + $0x2c] sm:$0xf]
    %v56 = vld [vmem:[%s1 + $0x30] sm:$0xf]
    %v57 = vld [vmem:[%s1 + $0x34] sm:$0xf]
    %v58 = vld [vmem:[%s1 + $0x38] sm:$0xf]
    %v59 = vld [vmem:[%s1 + $0x3c] sm:$0xf]
    %v60 = vld [vmem:[%s2] sm:$0x1]
    %v62 = vlaneseq
    %v63 = vshrl.u32 %v62, 7
    %v64 = vsub.s32 0, %v63
    %v65 = vrot.slane %v60, %v64
    %v83 = vunpack.c.l.b16 %v44
    %v84 = vunpack.c.l.b16 %v45
    %v85 = vunpack.c.l.b16 %v46
    %v86 = vunpack.c.l.b16 %v47
    %v87 = vunpack.c.l.b16 %v48
    %v88 = vunpack.c.l.b16 %v49
    %v89 = vunpack.c.l.b16 %v50
    %v90 = vunpack.c.l.b16 %v51
    %v91 = vunpack.c.l.b16 %v52
    %v92 = vunpack.c.l.b16 %v53
    %v93 = vunpack.c.l.b16 %v54
    %v94 = vunpack.c.l.b16 %v55
    %v95 = vunpack.c.l.b16 %v56
    %v96 = vunpack.c.l.b16 %v57
    %v97 = vunpack.c.l.b16 %v58
    %v98 = vunpack.c.l.b16 %v59
    %v99 = vpack.c.b16 %v84, %v83
    %v100 = vpack.c.b16 %v86, %v85
    %v101 = vpack.c.b16 %v88, %v87
    %v102 = vpack.c.b16 %v90, %v89
    %v103 = vpack.c.b16 %v92, %v91
    %v104 = vpack.c.b16 %v94, %v93
    %v105 = vpack.c.b16 %v96, %v95
    %v106 = vpack.c.b16 %v98, %v97
    %vm114 = vcmask 1039360
    %v116 = vsel %vm114, %v43, 0
    %vm118 = vcmask 1046528
    %vm119 = vcmask 1047552
    %v120 = vsel %vm118, 4294967295, 65535
    %v121 = vsel %vm119, %v120, 0
    %v123 = vand.u32 %v106, %v121
    %125 = vmatprep.subr.bf16.mxu0 0
    %126 = vmatpush1.bf16.msra.mxu0 %v99
    %127 = vmatprep.subr.bf16.mxu0 0
    %128 = vmatpush1.bf16.msra.mxu0 %v100
    %129 = vmatprep.subr.bf16.mxu0 0
    %130 = vmatpush1.bf16.msra.mxu0 %v101
    %131 = vmatprep.subr.bf16.mxu0 0
    %132 = vmatpush1.bf16.msra.mxu0 %v102
    %133 = vmatprep.subr.bf16.mxu0 0
    %134 = vmatpush1.bf16.msra.mxu0 %v103
    %135 = vmatprep.subr.bf16.mxu0 0
    %136 = vmatpush1.bf16.msra.mxu0 %v104
    %137 = vmatprep.subr.bf16.mxu0 0
    %138 = vmatpush1.bf16.msra.mxu0 %v105
    %139 = vmatprep.subr.bf16.mxu0 0
    %140 = vmatpush1.bf16.msra.mxu0 %v123
    %141 = vmatprep.subr.bf16.mxu0 0
    %142 = vmatpush1.bf16.msra.mxu0 0
    %143 = vmatprep.subr.bf16.mxu0 0
    %144 = vmatpush1.bf16.msra.mxu0 0
    %145 = vmatprep.subr.bf16.mxu0 0
    %146 = vmatpush1.bf16.msra.mxu0 0
    %147 = vmatprep.subr.bf16.mxu0 0
    %148 = vmatpush1.bf16.msra.mxu0 0
    %149 = vmatprep.subr.bf16.mxu0 0
    %150 = vmatpush1.bf16.msra.mxu0 0
    %151 = vmatprep.subr.bf16.mxu0 0
    %152 = vmatpush1.bf16.msra.mxu0 0
    %153 = vmatprep.subr.bf16.mxu0 0
    %154 = vmatpush1.bf16.msra.mxu0 0
    %155 = vmatprep.subr.bf16.mxu0 0
    %156 = vmatpush1.bf16.msra.mxu0 0
    %157 = vmatprep.mubr.bf16.mxu0 0
    %158 = vmatmul.mubr.bf16.gmra.mrb[0].mxu0 %v116
    %v159 = vpop.f32.mrb[0].mxu0
    %v160 = vadd.f32 %v65, %v159
    %v161 = vpop.f32.mrb[0].mxu0
    %v162 = vpop.f32.mrb[0].mxu0
    %v163 = vpop.f32.mrb[0].mxu0
    %164 = vdwg.mxu0
    %vm165 = vcmp.gt.f32.partialorder %v160, 0.0
    %v166 = vmul.f32 %v160, 0.01
    %v167 = vsel %vm165, %v160, %v166
    %v168 = vpack.c.bf16 %v167, %v167
    %v169 = vld [vmem:[#allocation2] sm:$0xf]
    %v170 = vld [vmem:[#allocation2 + $0x4] sm:$0xf]
    %v171 = vld [vmem:[#allocation2 + $0x8] sm:$0xf]
    %v172 = vld [vmem:[#allocation2 + $0xc] sm:$0xf]
    %v173 = vld [vmem:[#allocation2 + $0x10] sm:$0xf]
    %v174 = vld [vmem:[#allocation2 + $0x14] sm:$0xf]
    %v175 = vld [vmem:[#allocation2 + $0x18] sm:$0xf]
    %v176 = vld [vmem:[#allocation2 + $0x1c] sm:$0xf]
    %v177 = vld [vmem:[%s4] sm:$0x1]
    %v179 = vlaneseq
    %v180 = vshrl.u32 %v179, 7
    %v181 = vsub.s32 0, %v180
    %v182 = vrot.slane %v177, %v181
    %v192 = vunpack.c.l.b16 %v169
    %v193 = vunpack.c.l.b16 %v170
    %v194 = vunpack.c.l.b16 %v171
    %v195 = vunpack.c.l.b16 %v172
    %v196 = vunpack.c.l.b16 %v173
    %v197 = vunpack.c.l.b16 %v174
    %v198 = vunpack.c.l.b16 %v175
    %v199 = vunpack.c.l.b16 %v176
    %v200 = vpack.c.b16 %v193, %v192
    %v201 = vpack.c.b16 %v195, %v194
    %v202 = vpack.c.b16 %v197, %v196
    %v203 = vpack.c.b16 %v199, %v198
    %vm208 = vcmask 523264
    %v210 = vsel %vm208, %v168, 0
    %212 = vmatprep.subr.bf16.mxu0 0
    %213 = vmatpush1.bf16.msra.mxu0 %v200
    %214 = vmatprep.subr.bf16.mxu0 0
    %215 = vmatpush1.bf16.msra.mxu0 %v201
    %216 = vmatprep.subr.bf16.mxu0 0
    %217 = vmatpush1.bf16.msra.mxu0 %v202
    %218 = vmatprep.subr.bf16.mxu0 0
    %219 = vmatpush1.bf16.msra.mxu0 %v203
    %220 = vmatprep.subr.bf16.mxu0 0
    %221 = vmatpush1.bf16.msra.mxu0 0
    %222 = vmatprep.subr.bf16.mxu0 0
    %223 = vmatpush1.bf16.msra.mxu0 0
    %224 = vmatprep.subr.bf16.mxu0 0
    %225 = vmatpush1.bf16.msra.mxu0 0
    %226 = vmatprep.subr.bf16.mxu0 0
    %227 = vmatpush1.bf16.msra.mxu0 0
    %228 = vmatprep.subr.bf16.mxu0 0
    %229 = vmatpush1.bf16.msra.mxu0 0
    %230 = vmatprep.subr.bf16.mxu0 0
    %231 = vmatpush1.bf16.msra.mxu0 0
    %232 = vmatprep.subr.bf16.mxu0 0
    %233 = vmatpush1.bf16.msra.mxu0 0
    %234 = vmatprep.subr.bf16.mxu0 0
    %235 = vmatpush1.bf16.msra.mxu0 0
    %236 = vmatprep.subr.bf16.mxu0 0
    %237 = vmatpush1.bf16.msra.mxu0 0
    %238 = vmatprep.subr.bf16.mxu0 0
    %239 = vmatpush1.bf16.msra.mxu0 0
    %240 = vmatprep.subr.bf16.mxu0 0
    %241 = vmatpush1.bf16.msra.mxu0 0
    %242 = vmatprep.subr.bf16.mxu0 0
    %243 = vmatpush1.bf16.msra.mxu0 0
    %244 = vmatprep.mubr.bf16.mxu0 0
    %245 = vmatmul.mubr.bf16.gmra.mrb[0].mxu0 %v210
    %v246 = vpop.f32.mrb[0].mxu0
    %v247 = vadd.f32 %v182, %v246
    %v248 = vpop.f32.mrb[0].mxu0
    %v249 = vpop.f32.mrb[0].mxu0
    %v250 = vpop.f32.mrb[0].mxu0
    %251 = vdwg.mxu0
    %vm252 = vcmp.gt.f32.partialorder %v247, 0.0
    %v253 = vmul.f32 %v247, 0.01
    %v254 = vsel %vm252, %v247, %v253
    %v255 = vpack.c.bf16 %v254, %v254
    %s256 = scalar_lea.vmem [#allocation2], 32
    %v257 = vld [vmem:[%s256] sm:$0xf]
    %v258 = vld [vmem:[%s256 + $0x4] sm:$0xf]
    %v259 = vld [vmem:[%s256 + $0x8] sm:$0xf]
    %v260 = vld [vmem:[%s256 + $0xc] sm:$0xf]
    %v261 = vld [vmem:[%s256 + $0x10] sm:$0xf]
    %v262 = vld [vmem:[%s256 + $0x14] sm:$0xf]
    %v263 = vld [vmem:[%s256 + $0x18] sm:$0xf]
    %v264 = vld [vmem:[%s256 + $0x1c] sm:$0xf]
    %s265 = scalar_lea.vmem %s4, 1
    %v266 = vld [vmem:[%s265] sm:$0x1]
    %v268 = vlaneseq
    %v269 = vshrl.u32 %v268, 7
    %v270 = vsub.s32 0, %v269
    %v271 = vrot.slane %v266, %v270
    %v281 = vunpack.c.l.b16 %v257
    %v282 = vunpack.c.l.b16 %v258
    %v283 = vunpack.c.l.b16 %v259
    %v284 = vunpack.c.l.b16 %v260
    %v285 = vunpack.c.l.b16 %v261
    %v286 = vunpack.c.l.b16 %v262
    %v287 = vunpack.c.l.b16 %v263
    %v288 = vunpack.c.l.b16 %v264
    %v289 = vpack.c.b16 %v282, %v281
    %v290 = vpack.c.b16 %v284, %v283
    %v291 = vpack.c.b16 %v286, %v285
    %v292 = vpack.c.b16 %v288, %v287
    %v298 = vsel %vm208, %v255, 0
    %300 = vmatprep.subr.bf16.mxu0 0
    %301 = vmatpush1.bf16.msra.mxu0 %v289
    %302 = vmatprep.subr.bf16.mxu0 0
    %303 = vmatpush1.bf16.msra.mxu0 %v290
    %304 = vmatprep.subr.bf16.mxu0 0
    %305 = vmatpush1.bf16.msra.mxu0 %v291
    %306 = vmatprep.subr.bf16.mxu0 0
    %307 = vmatpush1.bf16.msra.mxu0 %v292
    %308 = vmatprep.subr.bf16.mxu0 0
    %309 = vmatpush1.bf16.msra.mxu0 0
    %310 = vmatprep.subr.bf16.mxu0 0
    %311 = vmatpush1.bf16.msra.mxu0 0
    %312 = vmatprep.subr.bf16.mxu0 0
    %313 = vmatpush1.bf16.msra.mxu0 0
    %314 = vmatprep.subr.bf16.mxu0 0
    %315 = vmatpush1.bf16.msra.mxu0 0
    %316 = vmatprep.subr.bf16.mxu0 0
    %317 = vmatpush1.bf16.msra.mxu0 0
    %318 = vmatprep.subr.bf16.mxu0 0
    %319 = vmatpush1.bf16.msra.mxu0 0
    %320 = vmatprep.subr.bf16.mxu0 0
    %321 = vmatpush1.bf16.msra.mxu0 0
    %322 = vmatprep.subr.bf16.mxu0 0
    %323 = vmatpush1.bf16.msra.mxu0 0
    %324 = vmatprep.subr.bf16.mxu0 0
    %325 = vmatpush1.bf16.msra.mxu0 0
    %326 = vmatprep.subr.bf16.mxu0 0
    %327 = vmatpush1.bf16.msra.mxu0 0
    %328 = vmatprep.subr.bf16.mxu0 0
    %329 = vmatpush1.bf16.msra.mxu0 0
    %330 = vmatprep.subr.bf16.mxu0 0
    %331 = vmatpush1.bf16.msra.mxu0 0
    %332 = vmatprep.mubr.bf16.mxu0 0
    %333 = vmatmul.mubr.bf16.gmra.mrb[0].mxu0 %v298
    %v334 = vpop.f32.mrb[0].mxu0
    %v335 = vadd.f32 %v271, %v334
    %v336 = vpop.f32.mrb[0].mxu0
    %v337 = vpop.f32.mrb[0].mxu0
    %v338 = vpop.f32.mrb[0].mxu0
    %339 = vdwg.mxu0
    %vm340 = vcmp.gt.f32.partialorder %v335, 0.0
    %v341 = vmul.f32 %v335, 0.01
    %v342 = vsel %vm340, %v335, %v341
    %v343 = vpack.c.bf16 %v342, %v342
    %s344 = scalar_lea.vmem [#allocation2], 64
    %v345 = vld [vmem:[%s344] sm:$0xf]
    %v346 = vld [vmem:[%s344 + $0x4] sm:$0xf]
    %v347 = vld [vmem:[%s344 + $0x8] sm:$0xf]
    %v348 = vld [vmem:[%s344 + $0xc] sm:$0xf]
    %v349 = vld [vmem:[%s344 + $0x10] sm:$0xf]
    %v350 = vld [vmem:[%s344 + $0x14] sm:$0xf]
    %v351 = vld [vmem:[%s344 + $0x18] sm:$0xf]
    %v352 = vld [vmem:[%s344 + $0x1c] sm:$0xf]
    %s353 = scalar_lea.vmem %s4, 2
    %v354 = vld [vmem:[%s353] sm:$0x1]
    %v356 = vlaneseq
    %v357 = vshrl.u32 %v356, 7
    %v358 = vsub.s32 0, %v357
    %v359 = vrot.slane %v354, %v358
    %v369 = vunpack.c.l.b16 %v345
    %v370 = vunpack.c.l.b16 %v346
    %v371 = vunpack.c.l.b16 %v347
    %v372 = vunpack.c.l.b16 %v348
    %v373 = vunpack.c.l.b16 %v349
    %v374 = vunpack.c.l.b16 %v350
    %v375 = vunpack.c.l.b16 %v351
    %v376 = vunpack.c.l.b16 %v352
    %v377 = vpack.c.b16 %v370, %v369
    %v378 = vpack.c.b16 %v372, %v371
    %v379 = vpack.c.b16 %v374, %v373
    %v380 = vpack.c.b16 %v376, %v375
    %v386 = vsel %vm208, %v343, 0
    %388 = vmatprep.subr.bf16.mxu0 0
    %389 = vmatpush1.bf16.msra.mxu0 %v377
    %390 = vmatprep.subr.bf16.mxu0 0
    %391 = vmatpush1.bf16.msra.mxu0 %v378
    %392 = vmatprep.subr.bf16.mxu0 0
    %393 = vmatpush1.bf16.msra.mxu0 %v379
    %394 = vmatprep.subr.bf16.mxu0 0
    %395 = vmatpush1.bf16.msra.mxu0 %v380
    %396 = vmatprep.subr.bf16.mxu0 0
    %397 = vmatpush1.bf16.msra.mxu0 0
    %398 = vmatprep.subr.bf16.mxu0 0
    %399 = vmatpush1.bf16.msra.mxu0 0
    %400 = vmatprep.subr.bf16.mxu0 0
    %401 = vmatpush1.bf16.msra.mxu0 0
    %402 = vmatprep.subr.bf16.mxu0 0
    %403 = vmatpush1.bf16.msra.mxu0 0
    %404 = vmatprep.subr.bf16.mxu0 0
    %405 = vmatpush1.bf16.msra.mxu0 0
    %406 = vmatprep.subr.bf16.mxu0 0
    %407 = vmatpush1.bf16.msra.mxu0 0
    %408 = vmatprep.subr.bf16.mxu0 0
    %409 = vmatpush1.bf16.msra.mxu0 0
    %410 = vmatprep.subr.bf16.mxu0 0
    %411 = vmatpush1.bf16.msra.mxu0 0
    %412 = vmatprep.subr.bf16.mxu0 0
    %413 = vmatpush1.bf16.msra.mxu0 0
    %414 = vmatprep.subr.bf16.mxu0 0
    %415 = vmatpush1.bf16.msra.mxu0 0
    %416 = vmatprep.subr.bf16.mxu0 0
    %417 = vmatpush1.bf16.msra.mxu0 0
    %418 = vmatprep.subr.bf16.mxu0 0
    %419 = vmatpush1.bf16.msra.mxu0 0
    %420 = vmatprep.mubr.bf16.mxu0 0
    %421 = vmatmul.mubr.bf16.gmra.mrb[0].mxu0 %v386
    %v422 = vpop.f32.mrb[0].mxu0
    %v423 = vadd.f32 %v359, %v422
    %v424 = vpop.f32.mrb[0].mxu0
    %v425 = vpop.f32.mrb[0].mxu0
    %v426 = vpop.f32.mrb[0].mxu0
    %427 = vdwg.mxu0
    %vm428 = vcmp.gt.f32.partialorder %v423, 0.0
    %v429 = vmul.f32 %v423, 0.01
    %v430 = vsel %vm428, %v423, %v429
    %v431 = vpack.c.bf16 %v430, %v430
    %s432 = scalar_lea.vmem [#allocation2], 96
    %v433 = vld [vmem:[%s432] sm:$0xf]
    %v434 = vld [vmem:[%s432 + $0x4] sm:$0xf]
    %v435 = vld [vmem:[%s432 + $0x8] sm:$0xf]
    %v436 = vld [vmem:[%s432 + $0xc] sm:$0xf]
    %v437 = vld [vmem:[%s432 + $0x10] sm:$0xf]
    %v438 = vld [vmem:[%s432 + $0x14] sm:$0xf]
    %v439 = vld [vmem:[%s432 + $0x18] sm:$0xf]
    %v440 = vld [vmem:[%s432 + $0x1c] sm:$0xf]
    %s441 = scalar_lea.vmem %s4, 3
    %v442 = vld [vmem:[%s441] sm:$0x1]
    %v444 = vlaneseq
    %v445 = vshrl.u32 %v444, 7
    %v446 = vsub.s32 0, %v445
    %v447 = vrot.slane %v442, %v446
    %v457 = vunpack.c.l.b16 %v433
    %v458 = vunpack.c.l.b16 %v434
    %v459 = vunpack.c.l.b16 %v435
    %v460 = vunpack.c.l.b16 %v436
    %v461 = vunpack.c.l.b16 %v437
    %v462 = vunpack.c.l.b16 %v438
    %v463 = vunpack.c.l.b16 %v439
    %v464 = vunpack.c.l.b16 %v440
    %v465 = vpack.c.b16 %v458, %v457
    %v466 = vpack.c.b16 %v460, %v459
    %v467 = vpack.c.b16 %v462, %v461
    %v468 = vpack.c.b16 %v464, %v463
    %v474 = vsel %vm208, %v431, 0
    %476 = vmatprep.subr.bf16.mxu0 0
    %477 = vmatpush1.bf16.msra.mxu0 %v465
    %478 = vmatprep.subr.bf16.mxu0 0
    %479 = vmatpush1.bf16.msra.mxu0 %v466
    %480 = vmatprep.subr.bf16.mxu0 0
    %481 = vmatpush1.bf16.msra.mxu0 %v467
    %482 = vmatprep.subr.bf16.mxu0 0
    %483 = vmatpush1.bf16.msra.mxu0 %v468
    %484 = vmatprep.subr.bf16.mxu0 0
    %485 = vmatpush1.bf16.msra.mxu0 0
    %486 = vmatprep.subr.bf16.mxu0 0
    %487 = vmatpush1.bf16.msra.mxu0 0
    %488 = vmatprep.subr.bf16.mxu0 0
    %489 = vmatpush1.bf16.msra.mxu0 0
    %490 = vmatprep.subr.bf16.mxu0 0
    %491 = vmatpush1.bf16.msra.mxu0 0
    %492 = vmatprep.subr.bf16.mxu0 0
    %493 = vmatpush1.bf16.msra.mxu0 0
    %494 = vmatprep.subr.bf16.mxu0 0
    %495 = vmatpush1.bf16.msra.mxu0 0
    %496 = vmatprep.subr.bf16.mxu0 0
    %497 = vmatpush1.bf16.msra.mxu0 0
    %498 = vmatprep.subr.bf16.mxu0 0
    %499 = vmatpush1.bf16.msra.mxu0 0
    %500 = vmatprep.subr.bf16.mxu0 0
    %501 = vmatpush1.bf16.msra.mxu0 0
    %502 = vmatprep.subr.bf16.mxu0 0
    %503 = vmatpush1.bf16.msra.mxu0 0
    %504 = vmatprep.subr.bf16.mxu0 0
    %505 = vmatpush1.bf16.msra.mxu0 0
    %506 = vmatprep.subr.bf16.mxu0 0
    %507 = vmatpush1.bf16.msra.mxu0 0
    %508 = vmatprep.mubr.bf16.mxu0 0
    %509 = vmatmul.mubr.bf16.gmra.mrb[0].mxu0 %v474
    %v510 = vpop.f32.mrb[0].mxu0
    %v511 = vadd.f32 %v447, %v510
    %v512 = vpop.f32.mrb[0].mxu0
    %v513 = vpop.f32.mrb[0].mxu0
    %v514 = vpop.f32.mrb[0].mxu0
    %515 = vdwg.mxu0
    %vm516 = vcmp.gt.f32.partialorder %v511, 0.0
    %v517 = vmul.f32 %v511, 0.01
    %v518 = vsel %vm516, %v511, %v517
    %v519 = vpack.c.bf16 %v518, %v518
    %s520 = scalar_lea.vmem [#allocation2], 128
    %v521 = vld [vmem:[%s520] sm:$0xf]
    %v522 = vld [vmem:[%s520 + $0x4] sm:$0xf]
    %v523 = vld [vmem:[%s520 + $0x8] sm:$0xf]
    %v524 = vld [vmem:[%s520 + $0xc] sm:$0xf]
    %v525 = vld [vmem:[%s520 + $0x10] sm:$0xf]
    %v526 = vld [vmem:[%s520 + $0x14] sm:$0xf]
    %v527 = vld [vmem:[%s520 + $0x18] sm:$0xf]
    %v528 = vld [vmem:[%s520 + $0x1c] sm:$0xf]
    %s529 = scalar_lea.vmem %s4, 4
    %v530 = vld [vmem:[%s529] sm:$0x1]
    %v532 = vlaneseq
    %v533 = vshrl.u32 %v532, 7
    %v534 = vsub.s32 0, %v533
    %v535 = vrot.slane %v530, %v534
    %v545 = vunpack.c.l.b16 %v521
    %v546 = vunpack.c.l.b16 %v522
    %v547 = vunpack.c.l.b16 %v523
    %v548 = vunpack.c.l.b16 %v524
    %v549 = vunpack.c.l.b16 %v525
    %v550 = vunpack.c.l.b16 %v526
    %v551 = vunpack.c.l.b16 %v527
    %v552 = vunpack.c.l.b16 %v528
    %v553 = vpack.c.b16 %v546, %v545
    %v554 = vpack.c.b16 %v548, %v547
    %v555 = vpack.c.b16 %v550, %v549
    %v556 = vpack.c.b16 %v552, %v551
    %v562 = vsel %vm208, %v519, 0
    %564 = vmatprep.subr.bf16.mxu0 0
    %565 = vmatpush1.bf16.msra.mxu0 %v553
    %566 = vmatprep.subr.bf16.mxu0 0
    %567 = vmatpush1.bf16.msra.mxu0 %v554
    %568 = vmatprep.subr.bf16.mxu0 0
    %569 = vmatpush1.bf16.msra.mxu0 %v555
    %570 = vmatprep.subr.bf16.mxu0 0
    %571 = vmatpush1.bf16.msra.mxu0 %v556
    %572 = vmatprep.subr.bf16.mxu0 0
    %573 = vmatpush1.bf16.msra.mxu0 0
    %574 = vmatprep.subr.bf16.mxu0 0
    %575 = vmatpush1.bf16.msra.mxu0 0
    %576 = vmatprep.subr.bf16.mxu0 0
    %577 = vmatpush1.bf16.msra.mxu0 0
    %578 = vmatprep.subr.bf16.mxu0 0
    %579 = vmatpush1.bf16.msra.mxu0 0
    %580 = vmatprep.subr.bf16.mxu0 0
    %581 = vmatpush1.bf16.msra.mxu0 0
    %582 = vmatprep.subr.bf16.mxu0 0
    %583 = vmatpush1.bf16.msra.mxu0 0
    %584 = vmatprep.subr.bf16.mxu0 0
    %585 = vmatpush1.bf16.msra.mxu0 0
    %586 = vmatprep.subr.bf16.mxu0 0
    %587 = vmatpush1.bf16.msra.mxu0 0
    %588 = vmatprep.subr.bf16.mxu0 0
    %589 = vmatpush1.bf16.msra.mxu0 0
    %590 = vmatprep.subr.bf16.mxu0 0
    %591 = vmatpush1.bf16.msra.mxu0 0
    %592 = vmatprep.subr.bf16.mxu0 0
    %593 = vmatpush1.bf16.msra.mxu0 0
    %594 = vmatprep.subr.bf16.mxu0 0
    %595 = vmatpush1.bf16.msra.mxu0 0
    %596 = vmatprep.mubr.bf16.mxu0 0
    %597 = vmatmul.mubr.bf16.gmra.mrb[0].mxu0 %v562
    %v598 = vpop.f32.mrb[0].mxu0
    %v599 = vadd.f32 %v535, %v598
    %v600 = vpop.f32.mrb[0].mxu0
    %v601 = vpop.f32.mrb[0].mxu0
    %v602 = vpop.f32.mrb[0].mxu0
    %603 = vdwg.mxu0
    %vm604 = vcmp.gt.f32.partialorder %v599, 0.0
    %v605 = vmul.f32 %v599, 0.01
    %v606 = vsel %vm604, %v599, %v605
    %v607 = vpack.c.bf16 %v606, %v606
    %v608 = vld [vmem:[%s5] sm:$0xf]
    %v609 = vld [vmem:[%s5 + $0x4] sm:$0xf]
    %v610 = vld [vmem:[%s5 + $0x8] sm:$0xf]
    %v611 = vld [vmem:[%s5 + $0xc] sm:$0xf]
    %v612 = vld [vmem:[%s5 + $0x10] sm:$0xf]
    %v613 = vld [vmem:[%s5 + $0x14] sm:$0xf]
    %v614 = vld [vmem:[%s5 + $0x18] sm:$0xf]
    %v615 = vld [vmem:[%s5 + $0x1c] sm:$0xf]
    %v616 = vld [vmem:[%s6] sm:$0x1]
    %v618 = vlaneseq
    %v619 = vshrl.u32 %v618, 7
    %v620 = vsub.s32 0, %v619
    %v621 = vrot.slane %v616, %v620
    %v631 = vunpack.c.l.b16 %v608
    %v632 = vunpack.c.l.b16 %v609
    %v633 = vunpack.c.l.b16 %v610
    %v634 = vunpack.c.l.b16 %v611
    %v635 = vunpack.c.l.b16 %v612
    %v636 = vunpack.c.l.b16 %v613
    %v637 = vunpack.c.l.b16 %v614
    %v638 = vunpack.c.l.b16 %v615
    %v639 = vpack.c.b16 %v632, %v631
    %v640 = vpack.c.b16 %v634, %v633
    %v641 = vpack.c.b16 %v636, %v635
    %v642 = vpack.c.b16 %v638, %v637
    %v648 = vsel %vm208, %v607, 0
    %650 = vmatprep.subr.bf16.mxu0 0
    %651 = vmatpush1.bf16.msra.mxu0 %v639
    %652 = vmatprep.subr.bf16.mxu0 0
    %653 = vmatpush1.bf16.msra.mxu0 %v640
    %654 = vmatprep.subr.bf16.mxu0 0
    %655 = vmatpush1.bf16.msra.mxu0 %v641
    %656 = vmatprep.subr.bf16.mxu0 0
    %657 = vmatpush1.bf16.msra.mxu0 %v642
    %658 = vmatprep.subr.bf16.mxu0 0
    %659 = vmatpush1.bf16.msra.mxu0 0
    %660 = vmatprep.subr.bf16.mxu0 0
    %661 = vmatpush1.bf16.msra.mxu0 0
    %662 = vmatprep.subr.bf16.mxu0 0
    %663 = vmatpush1.bf16.msra.mxu0 0
    %664 = vmatprep.subr.bf16.mxu0 0
    %665 = vmatpush1.bf16.msra.mxu0 0
    %666 = vmatprep.subr.bf16.mxu0 0
    %667 = vmatpush1.bf16.msra.mxu0 0
    %668 = vmatprep.subr.bf16.mxu0 0
    %669 = vmatpush1.bf16.msra.mxu0 0
    %670 = vmatprep.subr.bf16.mxu0 0
    %671 = vmatpush1.bf16.msra.mxu0 0
    %672 = vmatprep.subr.bf16.mxu0 0
    %673 = vmatpush1.bf16.msra.mxu0 0
    %674 = vmatprep.subr.bf16.mxu0 0
    %675 = vmatpush1.bf16.msra.mxu0 0
    %676 = vmatprep.subr.bf16.mxu0 0
    %677 = vmatpush1.bf16.msra.mxu0 0
    %678 = vmatprep.subr.bf16.mxu0 0
    %679 = vmatpush1.bf16.msra.mxu0 0
    %680 = vmatprep.subr.bf16.mxu0 0
    %681 = vmatpush1.bf16.msra.mxu0 0
    %682 = vmatprep.mubr.bf16.mxu0 0
    %683 = vmatmul.mubr.bf16.gmra.mrb[0].mxu0 %v648
    %v684 = vpop.f32.mrb[0].mxu0
    %v685 = vadd.f32 %v621, %v684
    %v686 = vpop.f32.mrb[0].mxu0
    %v687 = vpop.f32.mrb[0].mxu0
    %v688 = vpop.f32.mrb[0].mxu0
    %689 = vdwg.mxu0
    %690 = vst [vmem:[#allocation5] sm:$0xff] %v685
    // Predicated region
    $region34: #{tpu_custom_call.1} parent=1 // pred_check
      _
    $region35: #{tpu_custom_call.1} parent=1 // pred_check_branch
      %692 = sbr.rel (0) target = $region37
    $region36: #{tpu_custom_call.1} parent=1 // pred_region
      %s694 = ssub.s32 128, 128
      %695 = vsyncadd [#allocation4], %s694
      %s697 = sshll.u32 [#allocation5], 4
      %s698 = int_to_ptr.vmem [resolvable:$true] %s697
      %700 = dma.vmem_to_hbm [thread:$0]  %s698, 128, %s7, [#allocation4]
    $region37: #{tpu_custom_call.1} parent=1 // pred_fallthru
      _
    // Predicated region
    $region38: #{tpu_custom_call.1} parent=1 // pred_check
      _
    $region39: #{tpu_custom_call.1} parent=1 // pred_check_branch
      %702 = sbr.rel (0) target = $region41
    $region40: #{tpu_custom_call.1} parent=1 // pred_region
      %703 = dma.done [#allocation4], 128
    $region41: #{tpu_custom_call.1} parent=1 // pred_fallthru
      _
    %704 = vsyncpa [#allocation3], 1
    %705 = vsyncpa [#allocation4], 1

</llo_original>
